<compile_context>
chip_gen: v7x
topology: tpu7x:2x2x1
jax: 0.10.0
libtpu: 0.0.40
codegen_flags: <defaults>
</compile_context>

<pallas_src>
import functools

import jax
import jax.numpy as jnp
from jax.experimental import pallas as pl
from jax.experimental.pallas import tpu as pltpu


def _round_up(n, m):
    return ((n + m - 1) // m) * m


def _default_split_attention():
    """Split the attention matmul on 128-wide-MXU chips (v5e)."""
    try:
        kind = jax.devices()[0].device_kind.lower()
    except Exception:
        return False
    return ("v5e" in kind) or ("v5 lite" in kind) or ("v5litepod" in kind)


def dnn_kernel(x_ref, w1_ref, w2_ref, w3_ref, wa_ref, wout_ref, vec_ref, o_ref,
               *, split_attn):
    bf16 = jnp.bfloat16

    # Layer 1: Linear(4,64) + ReLU. bias b1 and the "ones" lane (col 64) are
    # folded into w1's K-padding rows; output padded 64->128 lanes.
    h = jnp.maximum(jnp.dot(x_ref[...], w1_ref[...],
                            preferred_element_type=jnp.float32), 0.0)       # (TB,128)

    # Layer 2: BatchNorm1d(64) + Linear(64,128) + ReLU, all folded into w2
    # (rows 0-63 = diag(s1)@W2, row 64 = b2 + t1@W2, rows 65-127 = 0).
    h = jnp.maximum(jnp.dot(h.astype(bf16), w2_ref[...],
                            preferred_element_type=jnp.float32), 0.0)       # (TB,128)

    # Layer 3: BatchNorm1d(128) + Linear(128,256) + ReLU; BN folded into w3,
    # fused bias b3' in vec row 0.
    h = jnp.maximum(jnp.dot(h.astype(bf16), w3_ref[...],
                            preferred_element_type=jnp.float32)
                    + vec_ref[0:1, :], 0.0)                                 # (TB,256)

    hb = h.astype(bf16)
    uom = vec_ref[1:2, :]                                                   # (1,256) u_omega x2

    if split_attn:
        # v5e: two 128x128 dots with the shared W_omega (no zero-block waste).
        u0 = jnp.tanh(jnp.dot(hb[:, :128], wa_ref[...],
                              preferred_element_type=jnp.float32))
        u1 = jnp.tanh(jnp.dot(hb[:, 128:], wa_ref[...],
                              preferred_element_type=jnp.float32))
        a0 = jnp.sum(u0 * uom[:, :128], axis=-1, keepdims=True)             # (TB,1)
        a1 = jnp.sum(u1 * uom[:, 128:], axis=-1, keepdims=True)             # (TB,1)
    else:
        # v6e/v7x: one fused dot with block-diag(W_omega, W_omega) (fills 256 MXU).
        u = jnp.tanh(jnp.dot(hb, wa_ref[...],
                             preferred_element_type=jnp.float32))           # (TB,256)
        z = u * uom
        a0 = jnp.sum(z[:, :128], axis=-1, keepdims=True)
        a1 = jnp.sum(z[:, 128:], axis=-1, keepdims=True)

    # softmax over the length-2 "sequence" axis == sigmoid of the score diff.
    s0 = jax.nn.sigmoid(a0 - a1)
    pooled = h[:, :128] * s0 + h[:, 128:] * (1.0 - s0)                      # (TB,128)

    # Output head: Linear(128,5) padded to 8 lanes (bias in vec row 2).
    o_ref[...] = (jnp.dot(pooled.astype(bf16), wout_ref[...],
                          preferred_element_type=jnp.float32)
                  + vec_ref[2:3, :8])                                       # (TB,8)


def pack_params(params, *, split_attention=None):
    """One-time packing of raw params into lane-dense / bf16 kernel operands."""
    (w1, b1, s1, t1, w2, b2, s2, t2, w3, b3, wom, uomt, wout, bout) = params
    bf16 = jnp.bfloat16
    if split_attention is None:
        split_attention = _default_split_attention()

    # w1p: (8,128). rows 0-3 = W1, row 4 = b1, w1p[4,64] = 1 ("ones" lane that
    # carries the folded layer-2 bias through the layer-1 ReLU).
    w1p = jnp.zeros((8, 128), jnp.float32)
    w1p = w1p.at[0:4, 0:64].set(w1)
    w1p = w1p.at[4, 0:64].set(b1[0])
    w1p = w1p.at[4, 64].set(1.0)
    w1p = w1p.astype(bf16)

    # w2p: (128,128). BN1 (s1,t1) and b2 folded in.
    w2p = jnp.zeros((128, 128), jnp.float32)
    w2p = w2p.at[0:64, :].set(s1[0][:, None] * w2)
    w2p = w2p.at[64, :].set(b2[0] + t1[0] @ w2)
    w2p = w2p.astype(bf16)

    # w3p: (128,256). BN2 folded into the weights; fused bias goes to vec row 0.
    w3p = (s2[0][:, None] * w3).astype(bf16)
    b3p = b3[0] + t2[0] @ w3                                                # (256,)

    if split_attention:
        wa = wom.astype(bf16)                                               # (128,128)
    else:
        wa = (jnp.zeros((256, 256), jnp.float32)
              .at[:128, :128].set(wom)
              .at[128:, 128:].set(wom)).astype(bf16)                        # (256,256)

    woutp = jnp.pad(wout, ((0, 0), (0, 3))).astype(bf16)                    # (128,8)

    # Packed small vectors: row 0 = b3', row 1 = [u_omega | u_omega], row 2[:5] = b_out.
    vec = jnp.zeros((8, 256), jnp.float32)
    vec = vec.at[0, :].set(b3p)
    vec = vec.at[1, :128].set(uomt[0])
    vec = vec.at[1, 128:].set(uomt[0])
    vec = vec.at[2, :5].set(bout[0])

    weights = (w1p, w2p, w3p, wa, woutp, vec)
    return weights, bool(split_attention)


def dnn_forward(x, weights, *, split_attn, block_b=2048):
    w1p, w2p, w3p, wa, woutp, vec = weights
    B = x.shape[0]

    # Batch tiling: big tiles amortize per-grid-step overhead; keep >= 2 blocks
    # when the batch allows it so v7x megacore ("parallel") can split the grid.
    block_b = _round_up(block_b, 16)
    Bp0 = _round_up(B, 16)
    tb = min(block_b, Bp0)
    if Bp0 // tb < 2 and Bp0 >= 32:
        tb = _round_up(pl.cdiv(Bp0, 2), 16)
    Bp = _round_up(Bp0, tb)

    # Augment the input: col 4 = 1 (bias lane for folded b1 / b2), cols 5-7 = 0,
    # pad batch rows, cast to bf16 (halves the input DMA).
    x_aug = jnp.concatenate(
        [x, jnp.ones((B, 1), x.dtype), jnp.zeros((B, 3), x.dtype)], axis=1)
    x_aug = jnp.pad(x_aug, ((0, Bp - B), (0, 0))).astype(jnp.bfloat16)      # (Bp,8)

    row_map = lambda i: (i, 0)
    const_map = lambda i: (0, 0)                 # weights stay VMEM-resident

    out = pl.pallas_call(
        functools.partial(dnn_kernel, split_attn=split_attn),
        out_shape=jax.ShapeDtypeStruct((Bp, 8), jnp.float32),
        grid=(Bp // tb,),
        in_specs=[pl.BlockSpec((tb, 8), row_map)]
                + [pl.BlockSpec(w.shape, const_map)
                   for w in (w1p, w2p, w3p, wa, woutp, vec)],
        out_specs=pl.BlockSpec((tb, 8), row_map),
        compiler_params=pltpu.CompilerParams(
            dimension_semantics=("parallel",)),
    )(x_aug, w1p, w2p, w3p, wa, woutp, vec)

    return out[:B, :5]


def init_params(key):
    ks = jax.random.split(key, 10)

    def lin(kw, kb, fan_in, fan_out):
        bound = 1.0 / jnp.sqrt(fan_in)
        w = jax.random.uniform(kw, (fan_in, fan_out), jnp.float32, -bound, bound)
        b = jax.random.uniform(kb, (1, fan_out), jnp.float32, -bound, bound)
        return w, b

    w1, b1 = lin(ks[0], ks[1], 4, 64)
    w2, b2 = lin(ks[2], ks[3], 64, 128)
    w3, b3 = lin(ks[4], ks[5], 128, 256)
    w_out, b_out = lin(ks[6], ks[7], 128, 5)

    # BatchNorm1d defaults: gamma=1, beta=0, running_mean=0, running_var=1.
    eps = 1e-5

    def bn_fold(n):
        gamma = jnp.ones((1, n), jnp.float32)
        beta = jnp.zeros((1, n), jnp.float32)
        mean = jnp.zeros((1, n), jnp.float32)
        var = jnp.ones((1, n), jnp.float32)
        scale = gamma / jnp.sqrt(var + eps)
        shift = beta - mean * scale
        return scale, shift

    s1, t1 = bn_fold(64)
    s2, t2 = bn_fold(128)

    w_omega = jax.random.uniform(ks[8], (128, 128), jnp.float32, -0.1, 0.1)
    u_omega = jax.random.uniform(ks[9], (128, 1), jnp.float32, -0.1, 0.1)
    u_omega_t = u_omega.reshape(1, 128)

    return (w1, b1, s1, t1,
            w2, b2, s2, t2,
            w3, b3,
            w_omega, u_omega_t,
            w_out, b_out)


def dnn_reference(x, params):
    (w1, b1, s1, t1, w2, b2, s2, t2, w3, b3, wom, uomt, wout, bout) = params
    h = jnp.maximum(x @ w1 + b1, 0.0) * s1 + t1
    h = jnp.maximum(h @ w2 + b2, 0.0) * s2 + t2
    h = jnp.maximum(h @ w3 + b3, 0.0)
    seq = h.reshape(x.shape[0], 2, 128)
    u = jnp.tanh(jnp.einsum('bsd,de->bse', seq, wom))
    att = jnp.einsum('bsd,d->bs', u, uomt[0])[..., None]          # (B, 2, 1)
    att = jax.nn.softmax(att, axis=1)
    pooled = jnp.sum(seq * att, axis=1)                           # (B, 128)
    return pooled @ wout + bout


if __name__ == "__main__":
    key = jax.random.PRNGKey(0)
    k_x, k_p = jax.random.split(key)

    # Small but grid-exercising shapes: B=24 -> padded to 32, tiled into two
    # 16-row blocks, so both batch tiling and the tail-padding path run.
    B = 24
    x = jax.random.normal(k_x, (B, 4), jnp.float32)
    params = init_params(k_p)

    # Weight packing hoisted out of the forward: runs once, reused every call.
    weights, split_attn = pack_params(params)

    out = dnn_forward(x, weights, split_attn=split_attn, block_b=32)
    jax.block_until_ready(out)

    ref = dnn_reference(x, params)
    assert out.shape == (B, 5)
    # bf16 MXU operands (f32 accumulation) -> slightly looser tolerance than f32.
    assert jnp.allclose(out, ref, atol=3e-2, rtol=3e-2), float(jnp.abs(out - ref).max())

    print("KERNEL_OK")
</pallas_src>

<mosaic_0001>
module attributes {stable_mosaic.version = 11 : i64} {
  func.func @dnn_kernel(%arg0: i32, %arg1: memref<16x8xbf16, #tpu.memory_space<vmem>>, %arg2: memref<8x128xbf16, #tpu.memory_space<vmem>>, %arg3: memref<128x128xbf16, #tpu.memory_space<vmem>>, %arg4: memref<128x256xbf16, #tpu.memory_space<vmem>>, %arg5: memref<256x256xbf16, #tpu.memory_space<vmem>>, %arg6: memref<128x8xbf16, #tpu.memory_space<vmem>>, %arg7: memref<8x256xf32, #tpu.memory_space<vmem>>, %arg8: memref<16x8xf32, #tpu.memory_space<vmem>>) attributes {dimension_semantics = [#tpu.dimension_semantics<parallel>], iteration_bounds = array<i64: 2>, scalar_prefetch = 0 : i64, scratch_operands = 0 : i64, tpu.core_type = #tpu.core_type<tc>, window_params = [{transform_indices = @transform_0, window_bounds = array<i64: 16, 8>}, {pipeline_mode = #tpu.pipeline_mode<synchronous>, transform_indices = @transform_1, window_bounds = array<i64: 8, 128>}, {pipeline_mode = #tpu.pipeline_mode<synchronous>, transform_indices = @transform_2, window_bounds = array<i64: 128, 128>}, {pipeline_mode = #tpu.pipeline_mode<synchronous>, transform_indices = @transform_3, window_bounds = array<i64: 128, 256>}, {pipeline_mode = #tpu.pipeline_mode<synchronous>, transform_indices = @transform_4, window_bounds = array<i64: 256, 256>}, {pipeline_mode = #tpu.pipeline_mode<synchronous>, transform_indices = @transform_5, window_bounds = array<i64: 128, 8>}, {pipeline_mode = #tpu.pipeline_mode<synchronous>, transform_indices = @transform_6, window_bounds = array<i64: 8, 256>}, {transform_indices = @transform_7, window_bounds = array<i64: 16, 8>}]} {
    %c0 = arith.constant 0 : index
    %c0_0 = arith.constant 0 : index
    %0 = vector.load %arg1[%c0, %c0_0] : memref<16x8xbf16, #tpu.memory_space<vmem>>, vector<16x8xbf16>
    %c0_1 = arith.constant 0 : index
    %c0_2 = arith.constant 0 : index
    %1 = vector.load %arg2[%c0_1, %c0_2] : memref<8x128xbf16, #tpu.memory_space<vmem>>, vector<8x128xbf16>
    %cst = arith.constant dense<0.000000e+00> : vector<16x128xf32>
    %2 = tpu.matmul %0, %1, %cst {dimension_numbers = #tpu.dot_dimension_numbers<[1], [0], [0], [1], [0, 0, 1, 1], [], []>} : vector<16x8xbf16>, vector<8x128xbf16>, vector<16x128xf32> -> vector<16x128xf32>
    %cst_3 = arith.constant 0.000000e+00 : f32
    %3 = vector.broadcast %cst_3 : f32 to vector<16x128xf32>
    %4 = arith.maximumf %2, %3 : vector<16x128xf32>
    %5 = arith.truncf %4 : vector<16x128xf32> to vector<16x128xbf16>
    %c0_4 = arith.constant 0 : index
    %c0_5 = arith.constant 0 : index
    %6 = vector.load %arg3[%c0_4, %c0_5] : memref<128x128xbf16, #tpu.memory_space<vmem>>, vector<128x128xbf16>
    %cst_6 = arith.constant dense<0.000000e+00> : vector<16x128xf32>
    %7 = tpu.matmul %5, %6, %cst_6 {dimension_numbers = #tpu.dot_dimension_numbers<[1], [0], [0], [1], [0, 0, 1, 1], [], []>} : vector<16x128xbf16>, vector<128x128xbf16>, vector<16x128xf32> -> vector<16x128xf32>
    %cst_7 = arith.constant 0.000000e+00 : f32
    %8 = vector.broadcast %cst_7 : f32 to vector<16x128xf32>
    %9 = arith.maximumf %7, %8 : vector<16x128xf32>
    %10 = arith.truncf %9 : vector<16x128xf32> to vector<16x128xbf16>
    %c0_8 = arith.constant 0 : index
    %c0_9 = arith.constant 0 : index
    %11 = vector.load %arg4[%c0_8, %c0_9] : memref<128x256xbf16, #tpu.memory_space<vmem>>, vector<128x256xbf16>
    %cst_10 = arith.constant dense<0.000000e+00> : vector<16x256xf32>
    %12 = tpu.matmul %10, %11, %cst_10 {dimension_numbers = #tpu.dot_dimension_numbers<[1], [0], [0], [1], [0, 0, 1, 1], [], []>} : vector<16x128xbf16>, vector<128x256xbf16>, vector<16x256xf32> -> vector<16x256xf32>
    %c0_11 = arith.constant 0 : index
    %c0_12 = arith.constant 0 : index
    %13 = vector.load %arg7[%c0_11, %c0_12] : memref<8x256xf32, #tpu.memory_space<vmem>>, vector<1x256xf32>
    %14 = vector.broadcast %13 : vector<1x256xf32> to vector<16x256xf32>
    %15 = arith.addf %12, %14 : vector<16x256xf32>
    %cst_13 = arith.constant 0.000000e+00 : f32
    %16 = vector.broadcast %cst_13 : f32 to vector<16x256xf32>
    %17 = arith.maximumf %15, %16 : vector<16x256xf32>
    %18 = arith.truncf %17 : vector<16x256xf32> to vector<16x256xbf16>
    %c1 = arith.constant 1 : index
    %c0_14 = arith.constant 0 : index
    %19 = vector.load %arg7[%c1, %c0_14] : memref<8x256xf32, #tpu.memory_space<vmem>>, vector<1x256xf32>
    %c0_15 = arith.constant 0 : index
    %c0_16 = arith.constant 0 : index
    %20 = vector.load %arg5[%c0_15, %c0_16] : memref<256x256xbf16, #tpu.memory_space<vmem>>, vector<256x256xbf16>
    %cst_17 = arith.constant dense<0.000000e+00> : vector<16x256xf32>
    %21 = tpu.matmul %18, %20, %cst_17 {dimension_numbers = #tpu.dot_dimension_numbers<[1], [0], [0], [1], [0, 0, 1, 1], [], []>} : vector<16x256xbf16>, vector<256x256xbf16>, vector<16x256xf32> -> vector<16x256xf32>
    %22 = math.tanh %21 : vector<16x256xf32>
    %23 = vector.broadcast %19 : vector<1x256xf32> to vector<16x256xf32>
    %24 = arith.mulf %22, %23 : vector<16x256xf32>
    %25 = vector.extract_strided_slice %24 {offsets = [0, 0], sizes = [16, 128], strides = [1, 1]} : vector<16x256xf32> to vector<16x128xf32>
    %cst_18 = arith.constant dense<0.000000e+00> : vector<16xf32>
    %26 = vector.multi_reduction <add>, %25, %cst_18 [1] : vector<16x128xf32> to vector<16xf32>
    %27 = vector.shape_cast %26 : vector<16xf32> to vector<16x1xf32>
    %28 = vector.extract_strided_slice %24 {offsets = [0, 128], sizes = [16, 128], strides = [1, 1]} : vector<16x256xf32> to vector<16x128xf32>
    %cst_19 = arith.constant dense<0.000000e+00> : vector<16xf32>
    %29 = vector.multi_reduction <add>, %28, %cst_19 [1] : vector<16x128xf32> to vector<16xf32>
    %30 = vector.shape_cast %29 : vector<16xf32> to vector<16x1xf32>
    %31 = arith.subf %27, %30 : vector<16x1xf32>
    %32 = arith.negf %31 : vector<16x1xf32>
    %33 = math.exp %32 : vector<16x1xf32>
    %cst_20 = arith.constant 1.000000e+00 : f32
    %34 = vector.broadcast %cst_20 : f32 to vector<16x1xf32>
    %35 = arith.addf %34, %33 : vector<16x1xf32>
    %36 = arith.divf %34, %35 : vector<16x1xf32>
    %37 = vector.extract_strided_slice %17 {offsets = [0, 0], sizes = [16, 128], strides = [1, 1]} : vector<16x256xf32> to vector<16x128xf32>
    %38 = vector.broadcast %36 : vector<16x1xf32> to vector<16x128xf32>
    %39 = arith.mulf %37, %38 : vector<16x128xf32>
    %40 = vector.extract_strided_slice %17 {offsets = [0, 128], sizes = [16, 128], strides = [1, 1]} : vector<16x256xf32> to vector<16x128xf32>
    %cst_21 = arith.constant 1.000000e+00 : f32
    %41 = vector.broadcast %cst_21 : f32 to vector<16x1xf32>
    %42 = arith.subf %41, %36 : vector<16x1xf32>
    %43 = vector.broadcast %42 : vector<16x1xf32> to vector<16x128xf32>
    %44 = arith.mulf %40, %43 : vector<16x128xf32>
    %45 = arith.addf %39, %44 : vector<16x128xf32>
    %46 = arith.truncf %45 : vector<16x128xf32> to vector<16x128xbf16>
    %c0_22 = arith.constant 0 : index
    %c0_23 = arith.constant 0 : index
    %47 = vector.load %arg6[%c0_22, %c0_23] : memref<128x8xbf16, #tpu.memory_space<vmem>>, vector<128x8xbf16>
    %cst_24 = arith.constant dense<0.000000e+00> : vector<16x8xf32>
    %48 = tpu.matmul %46, %47, %cst_24 {dimension_numbers = #tpu.dot_dimension_numbers<[1], [0], [0], [1], [0, 0, 1, 1], [], []>} : vector<16x128xbf16>, vector<128x8xbf16>, vector<16x8xf32> -> vector<16x8xf32>
    %c2 = arith.constant 2 : index
    %c0_25 = arith.constant 0 : index
    %49 = vector.load %arg7[%c2, %c0_25] : memref<8x256xf32, #tpu.memory_space<vmem>>, vector<1x8xf32>
    %50 = vector.broadcast %49 : vector<1x8xf32> to vector<16x8xf32>
    %51 = arith.addf %48, %50 : vector<16x8xf32>
    %c0_26 = arith.constant 0 : index
    %c0_27 = arith.constant 0 : index
    %52 = vector.load %arg8[%c0_26, %c0_27] : memref<16x8xf32, #tpu.memory_space<vmem>>, vector<16x8xf32>
    tpu.vector_store %arg8[%c0_26, %c0_27], %51 {strides = array<i32>} : memref<16x8xf32, #tpu.memory_space<vmem>>, vector<16x8xf32>,
    return
  }
  func.func @transform_0(%arg0: i32) -> (i32, i32) {
    %c0_i32 = arith.constant 0 : i32
    %c0_i32_0 = arith.constant 0 : i32
    return %arg0, %c0_i32 : i32, i32
  }
  func.func @transform_1(%arg0: i32) -> (i32, i32) {
    %c0_i32 = arith.constant 0 : i32
    %c0_i32_0 = arith.constant 0 : i32
    %c0_i32_1 = arith.constant 0 : i32
    return %c0_i32, %c0_i32_0 : i32, i32
  }
  func.func @transform_2(%arg0: i32) -> (i32, i32) {
    %c0_i32 = arith.constant 0 : i32
    %c0_i32_0 = arith.constant 0 : i32
    %c0_i32_1 = arith.constant 0 : i32
    return %c0_i32, %c0_i32_0 : i32, i32
  }
  func.func @transform_3(%arg0: i32) -> (i32, i32) {
    %c0_i32 = arith.constant 0 : i32
    %c0_i32_0 = arith.constant 0 : i32
    %c0_i32_1 = arith.constant 0 : i32
    return %c0_i32, %c0_i32_0 : i32, i32
  }
  func.func @transform_4(%arg0: i32) -> (i32, i32) {
    %c0_i32 = arith.constant 0 : i32
    %c0_i32_0 = arith.constant 0 : i32
    %c0_i32_1 = arith.constant 0 : i32
    return %c0_i32, %c0_i32_0 : i32, i32
  }
  func.func @transform_5(%arg0: i32) -> (i32, i32) {
    %c0_i32 = arith.constant 0 : i32
    %c0_i32_0 = arith.constant 0 : i32
    %c0_i32_1 = arith.constant 0 : i32
    return %c0_i32, %c0_i32_0 : i32, i32
  }
  func.func @transform_6(%arg0: i32) -> (i32, i32) {
    %c0_i32 = arith.constant 0 : i32
    %c0_i32_0 = arith.constant 0 : i32
    %c0_i32_1 = arith.constant 0 : i32
    return %c0_i32, %c0_i32_0 : i32, i32
  }
  func.func @transform_7(%arg0: i32) -> (i32, i32) {
    %c0_i32 = arith.constant 0 : i32
    %c0_i32_0 = arith.constant 0 : i32
    return %arg0, %c0_i32 : i32, i32
  }
}

</mosaic_0001>

<llo_original>
// kernel: tpu_custom_call.1
$region0: #{tpu_custom_call.1}
  #allocation0 [shape = 'u32[]', space=smem, size = 0x4, offset = 0x4, fixed_abs, tag = 'smem constant byte address 0x4 - core index']
  #allocation1 [shape = 'u32[144,128]{1,0:T(1,128)}', space=vmem, size = 0x12000, scoped, tag = 'internal scratch']
  %s0 = inlined_call_operand.vmem [shape: bf16[32,8], index: 0, kind: input, shape index: {}]
  %s1 = inlined_call_operand.vmem [shape: bf16[8,128], index: 1, kind: input, shape index: {}]
  %s2 = inlined_call_operand.vmem [shape: bf16[128,128], index: 2, kind: input, shape index: {}]
  %s3 = inlined_call_operand.hbm [shape: bf16[128,256], index: 3, kind: input, shape index: {}]
  %s4 = inlined_call_operand.hbm [shape: bf16[256,256], index: 4, kind: input, shape index: {}]
  %s5 = inlined_call_operand.vmem [shape: bf16[128,8], index: 5, kind: input, shape index: {}]
  %s6 = inlined_call_operand.vmem [shape: f32[8,256], index: 6, kind: input, shape index: {}]
  %s7 = inlined_call_operand.vmem [shape: f32[32,8], index: 7, kind: output, shape index: {}]
  %s8 = sld [smem:[#allocation0]]
  $region69: #{tpu_custom_call.1} parent=0
    _
  %s10 = ssub.s32 1, %s8
  %s11 = scalar_select 0, %s10, %s8
  $region1: #{tpu_custom_call.1} parent=0
    #allocation2 [shape = 'u8[65536]{0}', space=vmem, size = 0x10000, scoped, tag = 'input window, operand 3, single buffered']
    #allocation3 [shape = 's32[2]{0}', space=sflag, size = 0x8, scoped, tag = 'scoped memory for tpu_custom_call.1']
    #allocation4 [shape = 'u8[131072]{0}', space=vmem, size = 0x20000, scoped, tag = 'input window, operand 4, single buffered']
    #allocation5 [shape = 's32[1]{0}', space=sflag, size = 0x4, scoped, tag = 'scoped memory for tpu_custom_call.1']
    %12 = vsyncpa [#allocation3], 0
    %13 = vsyncpa [#allocation5], 0
    loop: start=0, step=1, limit=4
    $region2: #{tpu_custom_call.1} parent=1 // loop_pre_header
      _
    $region3: #{tpu_custom_call.1} parent=1 // loop_header
      %s15 = sphi 0, %s19
      %p16 = scmp.ge.s32.totalorder %s15, 4
      %s25 = sphi 0, %s27
      %s28 = sphi 0, %s25
      %s29 = sphi 0, %s28
      %s45 = sphi 0, %s29
      %s49 = sphi 0, %s49
      %s51 = sphi 0, %s49
      %s52 = sphi 0, %s51
      %s66 = sphi 0, %s52
      %s70 = sphi 0, %s70
      %s72 = sphi 0, %s70
      %s73 = sphi 0, %s72
      %s87 = sphi 0, %s73
      %s91 = sphi 0, %s91
      %s93 = sphi 0, %s91
      %s94 = sphi 0, %s93
      %s108 = sphi 0, %s94
      %s112 = sphi 0, %s112
      %s114 = sphi 0, %s112
      %s115 = sphi 0, %s114
      %s129 = sphi 0, %s115
      %s133 = sphi 0, %s133
      %s135 = sphi 0, %s133
      %s136 = sphi 0, %s135
      %s150 = sphi 0, %s136
      %s154 = sphi 0, %s154
      %s156 = sphi 0, %s154
      %s157 = sphi 0, %s156
      %s171 = sphi 0, %s157
      %s177 = sphi 0, %s179
      %s180 = sphi 0, %s177
      %s181 = sphi 0, %s180
      %s197 = sphi 0, %s181
    $region4: #{tpu_custom_call.1} parent=1 // loop_header_branch
      %18 = sbr.rel (%p16) target = $region8
    $region5: #{tpu_custom_call.1} parent=1 // loop_body
      %s20 = ssub.s32 %s15, 1
      %s21 = ssub.s32 %s15, 2
      %s22 = sadd.s32 %s15, 1
      %s23 = ssub.s32 %s15, %s22
      %p24 = scmp.eq.s32.totalorder %s23, 0
      %s26 = sadd.s32 %s25, 1
      %s27 = scalar_select %p24, %s25, %s26
      %p30 = pneg %p24
      %p31 = scmp.eq.s32.totalorder %s15, 1
      %p32 = por %p30, %p31
      %p33 = scmp.ne.s32.totalorder %s25, %s28
      %p34 = scmp.eq.s32.totalorder %s15, 0
      %p35 = por %p33, %p34
      %p36 = scmp.ne.s32.totalorder %s25, %s28
      %p37 = scmp.eq.s32.totalorder %s20, 1
      %p38 = por %p36, %p37
      %p39 = scmp.ne.s32.totalorder %s28, %s29
      %p40 = scmp.eq.s32.totalorder %s20, 0
      %p41 = por %p39, %p40
      %p42 = scmp.ne.s32.totalorder %s28, %s29
      %p43 = scmp.eq.s32.totalorder %s21, 1
      %p44 = por %p42, %p43
      %p46 = scmp.ne.s32.totalorder %s29, %s45
      %p47 = scmp.eq.s32.totalorder %s21, 0
      %p48 = por %p46, %p47
      %s50 = sadd.s32 %s49, 1
      %p53 = scmp.eq.s32.totalorder %s15, 1
      %p54 = scmp.ne.s32.totalorder %s49, %s51
      %p55 = scmp.eq.s32.totalorder %s15, 0
      %p56 = por %p54, %p55
      %p57 = scmp.ne.s32.totalorder %s49, %s51
      %p58 = scmp.eq.s32.totalorder %s20, 1
      %p59 = por %p57, %p58
      %p60 = scmp.ne.s32.totalorder %s51, %s52
      %p61 = scmp.eq.s32.totalorder %s20, 0
      %p62 = por %p60, %p61
      %p63 = scmp.ne.s32.totalorder %s51, %s52
      %p64 = scmp.eq.s32.totalorder %s21, 1
      %p65 = por %p63, %p64
      %p67 = scmp.ne.s32.totalorder %s52, %s66
      %p68 = scmp.eq.s32.totalorder %s21, 0
      %p69 = por %p67, %p68
      %s71 = sadd.s32 %s70, 1
      %p74 = scmp.eq.s32.totalorder %s15, 1
      %p75 = scmp.ne.s32.totalorder %s70, %s72
      %p76 = scmp.eq.s32.totalorder %s15, 0
      %p77 = por %p75, %p76
      %p78 = scmp.ne.s32.totalorder %s70, %s72
      %p79 = scmp.eq.s32.totalorder %s20, 1
      %p80 = por %p78, %p79
      %p81 = scmp.ne.s32.totalorder %s72, %s73
      %p82 = scmp.eq.s32.totalorder %s20, 0
      %p83 = por %p81, %p82
      %p84 = scmp.ne.s32.totalorder %s72, %s73
      %p85 = scmp.eq.s32.totalorder %s21, 1
      %p86 = por %p84, %p85
      %p88 = scmp.ne.s32.totalorder %s73, %s87
      %p89 = scmp.eq.s32.totalorder %s21, 0
      %p90 = por %p88, %p89
      %s92 = sadd.s32 %s91, 1
      %p95 = scmp.eq.s32.totalorder %s15, 1
      %p96 = scmp.ne.s32.totalorder %s91, %s93
      %p97 = scmp.eq.s32.totalorder %s15, 0
      %p98 = por %p96, %p97
      %p99 = scmp.ne.s32.totalorder %s91, %s93
      %p100 = scmp.eq.s32.totalorder %s20, 1
      %p101 = por %p99, %p100
      %p102 = scmp.ne.s32.totalorder %s93, %s94
      %p103 = scmp.eq.s32.totalorder %s20, 0
      %p104 = por %p102, %p103
      %p105 = scmp.ne.s32.totalorder %s93, %s94
      %p106 = scmp.eq.s32.totalorder %s21, 1
      %p107 = por %p105, %p106
      %p109 = scmp.ne.s32.totalorder %s94, %s108
      %p110 = scmp.eq.s32.totalorder %s21, 0
      %p111 = por %p109, %p110
      %s113 = sadd.s32 %s112, 1
      %p116 = scmp.eq.s32.totalorder %s15, 1
      %p117 = scmp.ne.s32.totalorder %s112, %s114
      %p118 = scmp.eq.s32.totalorder %s15, 0
      %p119 = por %p117, %p118
      %p120 = scmp.ne.s32.totalorder %s112, %s114
      %p121 = scmp.eq.s32.totalorder %s20, 1
      %p122 = por %p120, %p121
      %p123 = scmp.ne.s32.totalorder %s114, %s115
      %p124 = scmp.eq.s32.totalorder %s20, 0
      %p125 = por %p123, %p124
      %p126 = scmp.ne.s32.totalorder %s114, %s115
      %p127 = scmp.eq.s32.totalorder %s21, 1
      %p128 = por %p126, %p127
      %p130 = scmp.ne.s32.totalorder %s115, %s129
      %p131 = scmp.eq.s32.totalorder %s21, 0
      %p132 = por %p130, %p131
      %s134 = sadd.s32 %s133, 1
      %p137 = scmp.eq.s32.totalorder %s15, 1
      %p138 = scmp.ne.s32.totalorder %s133, %s135
      %p139 = scmp.eq.s32.totalorder %s15, 0
      %p140 = por %p138, %p139
      %p141 = scmp.ne.s32.totalorder %s133, %s135
      %p142 = scmp.eq.s32.totalorder %s20, 1
      %p143 = por %p141, %p142
      %p144 = scmp.ne.s32.totalorder %s135, %s136
      %p145 = scmp.eq.s32.totalorder %s20, 0
      %p146 = por %p144, %p145
      %p147 = scmp.ne.s32.totalorder %s135, %s136
      %p148 = scmp.eq.s32.totalorder %s21, 1
      %p149 = por %p147, %p148
      %p151 = scmp.ne.s32.totalorder %s136, %s150
      %p152 = scmp.eq.s32.totalorder %s21, 0
      %p153 = por %p151, %p152
      %s155 = sadd.s32 %s154, 1
      %p158 = scmp.eq.s32.totalorder %s15, 1
      %p159 = scmp.ne.s32.totalorder %s154, %s156
      %p160 = scmp.eq.s32.totalorder %s15, 0
      %p161 = por %p159, %p160
      %p162 = scmp.ne.s32.totalorder %s154, %s156
      %p163 = scmp.eq.s32.totalorder %s20, 1
      %p164 = por %p162, %p163
      %p165 = scmp.ne.s32.totalorder %s156, %s157
      %p166 = scmp.eq.s32.totalorder %s20, 0
      %p167 = por %p165, %p166
      %p168 = scmp.ne.s32.totalorder %s156, %s157
      %p169 = scmp.eq.s32.totalorder %s21, 1
      %p170 = por %p168, %p169
      %p172 = scmp.ne.s32.totalorder %s157, %s171
      %p173 = scmp.eq.s32.totalorder %s21, 0
      %p174 = por %p172, %p173
      %s175 = ssub.s32 %s15, %s22
      %p176 = scmp.eq.s32.totalorder %s175, 0
      %s178 = sadd.s32 %s177, 1
      %s179 = scalar_select %p176, %s177, %s178
      %p182 = pneg %p176
      %p183 = scmp.eq.s32.totalorder %s15, 1
      %p184 = por %p182, %p183
      %p185 = scmp.ne.s32.totalorder %s177, %s180
      %p186 = scmp.eq.s32.totalorder %s15, 0
      %p187 = por %p185, %p186
      %p188 = scmp.ne.s32.totalorder %s177, %s180
      %p189 = scmp.eq.s32.totalorder %s20, 1
      %p190 = por %p188, %p189
      %p191 = scmp.ne.s32.totalorder %s180, %s181
      %p192 = scmp.eq.s32.totalorder %s20, 0
      %p193 = por %p191, %p192
      %p194 = scmp.ne.s32.totalorder %s180, %s181
      %p195 = scmp.eq.s32.totalorder %s21, 1
      %p196 = por %p194, %p195
      %p198 = scmp.ne.s32.totalorder %s181, %s197
      %p199 = scmp.eq.s32.totalorder %s21, 0
      %p200 = por %p198, %p199
      %p201 = scmp.le.s32.totalorder 1, %s15
      %p202 = scmp.lt.s32.totalorder %s15, 3
      %p203 = pnand %p201, %p202
      %p204 = pneg %p203
      // Predicated region
      $region9: #{tpu_custom_call.1} parent=5 // pred_check
        _
      $region10: #{tpu_custom_call.1} parent=5 // pred_check_branch
        %206 = sbr.rel (%p203) target = $region12
      $region11: #{tpu_custom_call.1} parent=5 // pred_region
        %s207 = ssub.s32 %s15, 1
        // Predicated region
        $region13: #{tpu_custom_call.1} parent=11 // pred_check
          %p208 = pneg %p62
        $region14: #{tpu_custom_call.1} parent=11 // pred_check_branch
          %210 = sbr.rel (%p208) target = $region16
        $region15: #{tpu_custom_call.1} parent=11 // pred_region
          _
        $region16: #{tpu_custom_call.1} parent=11 // pred_fallthru
          _
        // Predicated region
        $region17: #{tpu_custom_call.1} parent=11 // pred_check
          %p211 = pneg %p83
        $region18: #{tpu_custom_call.1} parent=11 // pred_check_branch
          %213 = sbr.rel (%p211) target = $region20
        $region19: #{tpu_custom_call.1} parent=11 // pred_region
          _
        $region20: #{tpu_custom_call.1} parent=11 // pred_fallthru
          _
        // Predicated region
        $region21: #{tpu_custom_call.1} parent=11 // pred_check
          %p214 = pneg %p104
        $region22: #{tpu_custom_call.1} parent=11 // pred_check_branch
          %216 = sbr.rel (%p214) target = $region24
        $region23: #{tpu_custom_call.1} parent=11 // pred_region
          %s218 = ssub.s32 2048, 2048
          %219 = vsyncadd [#allocation3], %s218
          %s220 = sshll.u32 [#allocation2], 4
          %s221 = int_to_ptr.vmem [resolvable:$true] %s220
          %226 = dma.hbm_to_vmem [thread:$0]  %s3, 2048, %s221, [#allocation3], 128, 128, 8
        $region24: #{tpu_custom_call.1} parent=11 // pred_fallthru
          _
        // Predicated region
        $region25: #{tpu_custom_call.1} parent=11 // pred_check
          %p227 = pneg %p125
        $region26: #{tpu_custom_call.1} parent=11 // pred_check_branch
          %229 = sbr.rel (%p227) target = $region28
        $region27: #{tpu_custom_call.1} parent=11 // pred_region
          %s231 = ssub.s32 4096, 4096
          %232 = vsyncadd [#allocation5], %s231
          %s233 = sshll.u32 [#allocation4], 4
          %s234 = int_to_ptr.vmem [resolvable:$true] %s233
          %239 = dma.hbm_to_vmem [thread:$0]  %s4, 4096, %s234, [#allocation5], 128, 128, 8
        $region28: #{tpu_custom_call.1} parent=11 // pred_fallthru
          _
        // Predicated region
        $region29: #{tpu_custom_call.1} parent=11 // pred_check
          %p240 = pneg %p146
        $region30: #{tpu_custom_call.1} parent=11 // pred_check_branch
          %242 = sbr.rel (%p240) target = $region32
        $region31: #{tpu_custom_call.1} parent=11 // pred_region
          _
        $region32: #{tpu_custom_call.1} parent=11 // pred_fallthru
          _
        // Predicated region
        $region33: #{tpu_custom_call.1} parent=11 // pred_check
          %p243 = pneg %p167
        $region34: #{tpu_custom_call.1} parent=11 // pred_check_branch
          %245 = sbr.rel (%p243) target = $region36
        $region35: #{tpu_custom_call.1} parent=11 // pred_region
          _
        $region36: #{tpu_custom_call.1} parent=11 // pred_fallthru
          _
      $region12: #{tpu_custom_call.1} parent=5 // pred_fallthru
        _
      %p246 = scmp.lt.s32.totalorder %s15, 2
      // Predicated region
      $region37: #{tpu_custom_call.1} parent=5 // pred_check
        %p247 = pneg %p246
      $region38: #{tpu_custom_call.1} parent=5 // pred_check_branch
        %249 = sbr.rel (%p247) target = $region40
      $region39: #{tpu_custom_call.1} parent=5 // pred_region
        // Predicated region
        $region41: #{tpu_custom_call.1} parent=39 // pred_check
          %p250 = pneg %p35
        $region42: #{tpu_custom_call.1} parent=39 // pred_check_branch
          %252 = sbr.rel (%p250) target = $region44
        $region43: #{tpu_custom_call.1} parent=39 // pred_region
          %s253 = smul.u32 2, %s15
          %p254 = scmp.lt.s32.totalorder %s253, 3
          %s255 = scalar_select %p254, %s253, 3
          %s256 = smul.addr %s255, 4
          %s257 = scalar_lea.vmem %s0, %s256
          %s258 = smul.u32 2, %s15
        $region44: #{tpu_custom_call.1} parent=39 // pred_fallthru
          _
      $region40: #{tpu_custom_call.1} parent=5 // pred_fallthru
        _
      %p259 = scmp.le.s32.totalorder 1, %s15
      %p260 = scmp.lt.s32.totalorder %s15, 3
      %p261 = pnand %p259, %p260
      %p262 = pneg %p261
      // Predicated region
      $region45: #{tpu_custom_call.1} parent=5 // pred_check
        _
      $region46: #{tpu_custom_call.1} parent=5 // pred_check_branch
        %264 = sbr.rel (%p261) target = $region48
      $region47: #{tpu_custom_call.1} parent=5 // pred_region
        %s265 = ssub.s32 %s15, 1
        // Predicated region
        $region49: #{tpu_custom_call.1} parent=47 // pred_check
          %p266 = pneg %p104
        $region50: #{tpu_custom_call.1} parent=47 // pred_check_branch
          %268 = sbr.rel (%p266) target = $region52
        $region51: #{tpu_custom_call.1} parent=47 // pred_region
          %269 = dma.done [#allocation3], 2048
        $region52: #{tpu_custom_call.1} parent=47 // pred_fallthru
          _
        // Predicated region
        $region53: #{tpu_custom_call.1} parent=47 // pred_check
          %p270 = pneg %p125
        $region54: #{tpu_custom_call.1} parent=47 // pred_check_branch
          %272 = sbr.rel (%p270) target = $region56
        $region55: #{tpu_custom_call.1} parent=47 // pred_region
          %273 = dma.done [#allocation5], 4096
        $region56: #{tpu_custom_call.1} parent=47 // pred_fallthru
          _
        %s274 = smul.u32 2, %s20
        %p275 = scmp.lt.s32.totalorder %s274, 3
        %s276 = scalar_select %p275, %s274, 3
        %s277 = smul.addr %s276, 4
        %s278 = scalar_lea.vmem %s0, %s277
        %p279 = pneg %p41
        %p280 = pneg %p38
        %p281 = pneg %p62
        %p282 = pneg %p59
        %p283 = pneg %p83
        %p284 = pneg %p80
        %p285 = pneg %p104
        %p286 = pneg %p101
        %p287 = pneg %p125
        %p288 = pneg %p122
        %p289 = pneg %p146
        %p290 = pneg %p143
        %p291 = pneg %p167
        %p292 = pneg %p164
        %p293 = pneg %p193
        %p294 = pneg %p190
        %s295 = smul.u32 2, %s20
        %p296 = scmp.lt.s32.totalorder %s295, 3
        %s297 = scalar_select %p296, %s295, 3
        %s298 = smul.addr %s297, 8
        %s299 = scalar_lea.vmem %s7, %s298
        %s300 = smul.u32 2, %s20
        %p301 = scmp.lt.s32.totalorder %s300, 3
        %s302 = scalar_select %p301, %s300, 3
        %s303 = smul.addr %s302, 4
        %s304 = scalar_lea.vmem %s0, %s303
        %s305 = smul.u32 2, %s20
        %s306 = smul.u32 2, %s20
        %p307 = scmp.lt.s32.totalorder %s306, 3
        %s308 = scalar_select %p307, %s306, 3
        %s309 = smul.addr %s308, 8
        %s310 = scalar_lea.vmem %s7, %s309
        %s311 = smul.u32 2, %s20
        %v313 = vld [vmem:[%s304] sm:$0xf]
        %v314 = vld [vmem:[%s304 + $0x4] sm:$0xf]
        %v315 = vld [vmem:[%s1] sm:$0xf]
        %v318 = vunpack.c.l.b16 %v313
        %v319 = vunpack.c.l.b16 %v314
        %v320 = vpack.c.b16 %v319, %v318
        %vm321 = vcmask 64512
        %v323 = vsel %vm321, %v320, 0
        %vm325 = vcmask 1043456
        %v327 = vsel %vm325, %v315, 0
        %329 = vmatprep.subr.bf16.mxu0 0
        %330 = vmatpush1.bf16.msra.mxu0 %v327
        %331 = vmatprep.subr.bf16.mxu0 0
        %332 = vmatpush1.bf16.msra.mxu0 0
        %333 = vmatprep.subr.bf16.mxu0 0
        %334 = vmatpush1.bf16.msra.mxu0 0
        %335 = vmatprep.subr.bf16.mxu0 0
        %336 = vmatpush1.bf16.msra.mxu0 0
        %337 = vmatprep.subr.bf16.mxu0 0
        %338 = vmatpush1.bf16.msra.mxu0 0
        %339 = vmatprep.subr.bf16.mxu0 0
        %340 = vmatpush1.bf16.msra.mxu0 0
        %341 = vmatprep.subr.bf16.mxu0 0
        %342 = vmatpush1.bf16.msra.mxu0 0
        %343 = vmatprep.subr.bf16.mxu0 0
        %344 = vmatpush1.bf16.msra.mxu0 0
        %345 = vmatprep.subr.bf16.mxu0 0
        %346 = vmatpush1.bf16.msra.mxu0 0
        %347 = vmatprep.subr.bf16.mxu0 0
        %348 = vmatpush1.bf16.msra.mxu0 0
        %349 = vmatprep.subr.bf16.mxu0 0
        %350 = vmatpush1.bf16.msra.mxu0 0
        %351 = vmatprep.subr.bf16.mxu0 0
        %352 = vmatpush1.bf16.msra.mxu0 0
        %353 = vmatprep.subr.bf16.mxu0 0
        %354 = vmatpush1.bf16.msra.mxu0 0
        %355 = vmatprep.subr.bf16.mxu0 0
        %356 = vmatpush1.bf16.msra.mxu0 0
        %357 = vmatprep.subr.bf16.mxu0 0
        %358 = vmatpush1.bf16.msra.mxu0 0
        %359 = vmatprep.subr.bf16.mxu0 0
        %360 = vmatpush1.bf16.msra.mxu0 0
        %361 = vmatprep.mubr.bf16.mxu0 0
        %362 = vmatmul.mubr.bf16.gmra.mrb[0].mxu0 %v323
        %v363 = vpop.f32.mrb[0].mxu0
        %v364 = vadd.f32 0.0, %v363
        %v365 = vpop.f32.mrb[0].mxu0
        %v366 = vpop.f32.mrb[0].mxu0
        %v367 = vadd.f32 0.0, %v366
        %v368 = vpop.f32.mrb[0].mxu0
        %369 = vdwg.mxu0
        %v370 = vmax.f32 %v364, 0.0
        %v371 = vmax.f32 %v367, 0.0
        %v372 = vpack.c.bf16 %v371, %v370
        %v373 = vld [vmem:[%s2] sm:$0xf]
        %v374 = vld [vmem:[%s2 + $0x4] sm:$0xf]
        %v375 = vld [vmem:[%s2 + $0x8] sm:$0xf]
        %v376 = vld [vmem:[%s2 + $0xc] sm:$0xf]
        %v377 = vld [vmem:[%s2 + $0x10] sm:$0xf]
        %v378 = vld [vmem:[%s2 + $0x14] sm:$0xf]
        %v379 = vld [vmem:[%s2 + $0x18] sm:$0xf]
        %v380 = vld [vmem:[%s2 + $0x1c] sm:$0xf]
        %v381 = vld [vmem:[%s2 + $0x20] sm:$0xf]
        %v382 = vld [vmem:[%s2 + $0x24] sm:$0xf]
        %v383 = vld [vmem:[%s2 + $0x28] sm:$0xf]
        %v384 = vld [vmem:[%s2 + $0x2c] sm:$0xf]
        %v385 = vld [vmem:[%s2 + $0x30] sm:$0xf]
        %v386 = vld [vmem:[%s2 + $0x34] sm:$0xf]
        %v387 = vld [vmem:[%s2 + $0x38] sm:$0xf]
        %v388 = vld [vmem:[%s2 + $0x3c] sm:$0xf]
        %v405 = vunpack.c.l.b16 %v373
        %v406 = vunpack.c.l.b16 %v374
        %v407 = vunpack.c.l.b16 %v375
        %v408 = vunpack.c.l.b16 %v376
        %v409 = vunpack.c.l.b16 %v377
        %v410 = vunpack.c.l.b16 %v378
        %v411 = vunpack.c.l.b16 %v379
        %v412 = vunpack.c.l.b16 %v380
        %v413 = vunpack.c.l.b16 %v381
        %v414 = vunpack.c.l.b16 %v382
        %v415 = vunpack.c.l.b16 %v383
        %v416 = vunpack.c.l.b16 %v384
        %v417 = vunpack.c.l.b16 %v385
        %v418 = vunpack.c.l.b16 %v386
        %v419 = vunpack.c.l.b16 %v387
        %v420 = vunpack.c.l.b16 %v388
        %v421 = vpack.c.b16 %v406, %v405
        %v422 = vpack.c.b16 %v408, %v407
        %v423 = vpack.c.b16 %v410, %v409
        %v424 = vpack.c.b16 %v412, %v411
        %v425 = vpack.c.b16 %v414, %v413
        %v426 = vpack.c.b16 %v416, %v415
        %v427 = vpack.c.b16 %v418, %v417
        %v428 = vpack.c.b16 %v420, %v419
        %437 = vmatprep.subr.bf16.mxu0 0
        %438 = vmatpush1.bf16.msra.mxu0 %v421
        %439 = vmatprep.subr.bf16.mxu0 0
        %440 = vmatpush1.bf16.msra.mxu0 %v422
        %441 = vmatprep.subr.bf16.mxu0 0
        %442 = vmatpush1.bf16.msra.mxu0 %v423
        %443 = vmatprep.subr.bf16.mxu0 0
        %444 = vmatpush1.bf16.msra.mxu0 %v424
        %445 = vmatprep.subr.bf16.mxu0 0
        %446 = vmatpush1.bf16.msra.mxu0 %v425
        %447 = vmatprep.subr.bf16.mxu0 0
        %448 = vmatpush1.bf16.msra.mxu0 %v426
        %449 = vmatprep.subr.bf16.mxu0 0
        %450 = vmatpush1.bf16.msra.mxu0 %v427
        %451 = vmatprep.subr.bf16.mxu0 0
        %452 = vmatpush1.bf16.msra.mxu0 %v428
        %453 = vmatprep.subr.bf16.mxu0 0
        %454 = vmatpush1.bf16.msra.mxu0 0
        %455 = vmatprep.subr.bf16.mxu0 0
        %456 = vmatpush1.bf16.msra.mxu0 0
        %457 = vmatprep.subr.bf16.mxu0 0
        %458 = vmatpush1.bf16.msra.mxu0 0
        %459 = vmatprep.subr.bf16.mxu0 0
        %460 = vmatpush1.bf16.msra.mxu0 0
        %461 = vmatprep.subr.bf16.mxu0 0
        %462 = vmatpush1.bf16.msra.mxu0 0
        %463 = vmatprep.subr.bf16.mxu0 0
        %464 = vmatpush1.bf16.msra.mxu0 0
        %465 = vmatprep.subr.bf16.mxu0 0
        %466 = vmatpush1.bf16.msra.mxu0 0
        %467 = vmatprep.subr.bf16.mxu0 0
        %468 = vmatpush1.bf16.msra.mxu0 0
        %469 = vmatprep.mubr.bf16.mxu0 0
        %470 = vmatmul.mubr.bf16.gmra.mrb[0].mxu0 %v372
        %v471 = vpop.f32.mrb[0].mxu0
        %v472 = vadd.f32 0.0, %v471
        %v473 = vpop.f32.mrb[0].mxu0
        %v474 = vpop.f32.mrb[0].mxu0
        %v475 = vadd.f32 0.0, %v474
        %v476 = vpop.f32.mrb[0].mxu0
        %477 = vdwg.mxu0
        %v478 = vmax.f32 %v472, 0.0
        %v479 = vmax.f32 %v475, 0.0
        %v480 = vpack.c.bf16 %v479, %v478
        %v481 = vld [vmem:[#allocation2] sm:$0xff]
        %v482 = vld [vmem:[#allocation2 + $0x8] sm:$0xff]
        %v483 = vld [vmem:[#allocation2 + $0x10] sm:$0xff]
        %v484 = vld [vmem:[#allocation2 + $0x18] sm:$0xff]
        %v485 = vld [vmem:[#allocation2 + $0x20] sm:$0xff]
        %v486 = vld [vmem:[#allocation2 + $0x28] sm:$0xff]
        %v487 = vld [vmem:[#allocation2 + $0x30] sm:$0xff]
        %v488 = vld [vmem:[#allocation2 + $0x38] sm:$0xff]
        %v489 = vld [vmem:[#allocation2 + $0x40] sm:$0xff]
        %v490 = vld [vmem:[#allocation2 + $0x48] sm:$0xff]
        %v491 = vld [vmem:[#allocation2 + $0x50] sm:$0xff]
        %v492 = vld [vmem:[#allocation2 + $0x58] sm:$0xff]
        %v493 = vld [vmem:[#allocation2 + $0x60] sm:$0xff]
        %v494 = vld [vmem:[#allocation2 + $0x68] sm:$0xff]
        %v495 = vld [vmem:[#allocation2 + $0x70] sm:$0xff]
        %v496 = vld [vmem:[#allocation2 + $0x78] sm:$0xff]
        %v497 = vld [vmem:[%s6] ss:$8 sm:$0x3]
        %v499 = vlaneseq
        %v500 = vshrl.u32 %v499, 7
        %v501 = vsub.s32 0, %v500
        %v502 = vrot.slane %v497, %v501
        %v503 = vlaneseq
        %v504 = vshrl.u32 %v503, 7
        %v505 = vsub.s32 1, %v504
        %v506 = vrot.slane %v497, %v505
        %v525 = vunpack.c.l.b16 %v481
        %v526 = vunpack.c.h.b16 %v481
        %v527 = vunpack.c.l.b16 %v482
        %v528 = vunpack.c.h.b16 %v482
        %v529 = vunpack.c.l.b16 %v483
        %v530 = vunpack.c.h.b16 %v483
        %v531 = vunpack.c.l.b16 %v484
        %v532 = vunpack.c.h.b16 %v484
        %v533 = vunpack.c.l.b16 %v485
        %v534 = vunpack.c.h.b16 %v485
        %v535 = vunpack.c.l.b16 %v486
        %v536 = vunpack.c.h.b16 %v486
        %v537 = vunpack.c.l.b16 %v487
        %v538 = vunpack.c.h.b16 %v487
        %v539 = vunpack.c.l.b16 %v488
        %v540 = vunpack.c.h.b16 %v488
        %v541 = vunpack.c.l.b16 %v489
        %v542 = vunpack.c.h.b16 %v489
        %v543 = vunpack.c.l.b16 %v490
        %v544 = vunpack.c.h.b16 %v490
        %v545 = vunpack.c.l.b16 %v491
        %v546 = vunpack.c.h.b16 %v491
        %v547 = vunpack.c.l.b16 %v492
        %v548 = vunpack.c.h.b16 %v492
        %v549 = vunpack.c.l.b16 %v493
        %v550 = vunpack.c.h.b16 %v493
        %v551 = vunpack.c.l.b16 %v494
        %v552 = vunpack.c.h.b16 %v494
        %v553 = vunpack.c.l.b16 %v495
        %v554 = vunpack.c.h.b16 %v495
        %v555 = vunpack.c.l.b16 %v496
        %v556 = vunpack.c.h.b16 %v496
        %v557 = vpack.c.b16 %v527, %v525
        %v558 = vpack.c.b16 %v528, %v526
        %v559 = vpack.c.b16 %v531, %v529
        %v560 = vpack.c.b16 %v532, %v530
        %v561 = vpack.c.b16 %v535, %v533
        %v562 = vpack.c.b16 %v536, %v534
        %v563 = vpack.c.b16 %v539, %v537
        %v564 = vpack.c.b16 %v540, %v538
        %v565 = vpack.c.b16 %v543, %v541
        %v566 = vpack.c.b16 %v544, %v542
        %v567 = vpack.c.b16 %v547, %v545
        %v568 = vpack.c.b16 %v548, %v546
        %v569 = vpack.c.b16 %v551, %v549
        %v570 = vpack.c.b16 %v552, %v550
        %v571 = vpack.c.b16 %v555, %v553
        %v572 = vpack.c.b16 %v556, %v554
        %589 = vmatprep.subr.bf16.mxu0 %v558
        %590 = vmatpush1.bf16.msra.mxu0 %v557
        %591 = vmatprep.subr.bf16.mxu0 %v560
        %592 = vmatpush1.bf16.msra.mxu0 %v559
        %593 = vmatprep.subr.bf16.mxu0 %v562
        %594 = vmatpush1.bf16.msra.mxu0 %v561
        %595 = vmatprep.subr.bf16.mxu0 %v564
        %596 = vmatpush1.bf16.msra.mxu0 %v563
        %597 = vmatprep.subr.bf16.mxu0 %v566
        %598 = vmatpush1.bf16.msra.mxu0 %v565
        %599 = vmatprep.subr.bf16.mxu0 %v568
        %600 = vmatpush1.bf16.msra.mxu0 %v567
        %601 = vmatprep.subr.bf16.mxu0 %v570
        %602 = vmatpush1.bf16.msra.mxu0 %v569
        %603 = vmatprep.subr.bf16.mxu0 %v572
        %604 = vmatpush1.bf16.msra.mxu0 %v571
        %605 = vmatprep.subr.bf16.mxu0 0
        %606 = vmatpush1.bf16.msra.mxu0 0
        %607 = vmatprep.subr.bf16.mxu0 0
        %608 = vmatpush1.bf16.msra.mxu0 0
        %609 = vmatprep.subr.bf16.mxu0 0
        %610 = vmatpush1.bf16.msra.mxu0 0
        %611 = vmatprep.subr.bf16.mxu0 0
        %612 = vmatpush1.bf16.msra.mxu0 0
        %613 = vmatprep.subr.bf16.mxu0 0
        %614 = vmatpush1.bf16.msra.mxu0 0
        %615 = vmatprep.subr.bf16.mxu0 0
        %616 = vmatpush1.bf16.msra.mxu0 0
        %617 = vmatprep.subr.bf16.mxu0 0
        %618 = vmatpush1.bf16.msra.mxu0 0
        %619 = vmatprep.subr.bf16.mxu0 0
        %620 = vmatpush1.bf16.msra.mxu0 0
        %621 = vmatprep.mubr.bf16.mxu0 0
        %622 = vmatmul.mubr.bf16.gmra.mrb[0].mxu0 %v480
        %v623 = vpop.f32.mrb[0].mxu0
        %v624 = vadd.f32 %v502, %v623
        %v625 = vpop.f32.mrb[0].mxu0
        %v626 = vadd.f32 %v506, %v625
        %v627 = vpop.f32.mrb[0].mxu0
        %v628 = vadd.f32 %v502, %v627
        %v629 = vpop.f32.mrb[0].mxu0
        %v630 = vadd.f32 %v506, %v629
        %631 = vdwg.mxu0
        %v632 = vmax.f32 %v624, 0.0
        %v633 = vmax.f32 %v626, 0.0
        %v634 = vmax.f32 %v628, 0.0
        %v635 = vmax.f32 %v630, 0.0
        %v636 = vpack.c.bf16 %v634, %v632
        %v637 = vpack.c.bf16 %v635, %v633
        %s638 = scalar_lea.vmem %s6, 1
        %v639 = vld [vmem:[%s638] ss:$8 sm:$0x3]
        %v640 = vld [vmem:[#allocation4] sm:$0xff]
        %v641 = vld [vmem:[#allocation4 + $0x8] sm:$0xff]
        %v642 = vld [vmem:[#allocation4 + $0x10] sm:$0xff]
        %v643 = vld [vmem:[#allocation4 + $0x18] sm:$0xff]
        %v644 = vld [vmem:[#allocation4 + $0x20] sm:$0xff]
        %v645 = vld [vmem:[#allocation4 + $0x28] sm:$0xff]
        %v646 = vld [vmem:[#allocation4 + $0x30] sm:$0xff]
        %v647 = vld [vmem:[#allocation4 + $0x38] sm:$0xff]
        %v648 = vld [vmem:[#allocation4 + $0x40] sm:$0xff]
        %v649 = vld [vmem:[#allocation4 + $0x48] sm:$0xff]
        %v650 = vld [vmem:[#allocation4 + $0x50] sm:$0xff]
        %v651 = vld [vmem:[#allocation4 + $0x58] sm:$0xff]
        %v652 = vld [vmem:[#allocation4 + $0x60] sm:$0xff]
        %v653 = vld [vmem:[#allocation4 + $0x68] sm:$0xff]
        %v654 = vld [vmem:[#allocation4 + $0x70] sm:$0xff]
        %v655 = vld [vmem:[#allocation4 + $0x78] sm:$0xff]
        %v656 = vld [vmem:[#allocation4 + $0x80] sm:$0xff]
        %v657 = vld [vmem:[#allocation4 + $0x88] sm:$0xff]
        %v658 = vld [vmem:[#allocation4 + $0x90] sm:$0xff]
        %v659 = vld [vmem:[#allocation4 + $0x98] sm:$0xff]
        %v660 = vld [vmem:[#allocation4 + $0xa0] sm:$0xff]
        %v661 = vld [vmem:[#allocation4 + $0xa8] sm:$0xff]
        %v662 = vld [vmem:[#allocation4 + $0xb0] sm:$0xff]
        %v663 = vld [vmem:[#allocation4 + $0xb8] sm:$0xff]
        %v664 = vld [vmem:[#allocation4 + $0xc0] sm:$0xff]
        %v665 = vld [vmem:[#allocation4 + $0xc8] sm:$0xff]
        %v666 = vld [vmem:[#allocation4 + $0xd0] sm:$0xff]
        %v667 = vld [vmem:[#allocation4 + $0xd8] sm:$0xff]
        %v668 = vld [vmem:[#allocation4 + $0xe0] sm:$0xff]
        %v669 = vld [vmem:[#allocation4 + $0xe8] sm:$0xff]
        %v670 = vld [vmem:[#allocation4 + $0xf0] sm:$0xff]
        %v671 = vld [vmem:[#allocation4 + $0xf8] sm:$0xff]
        %v704 = vunpack.c.l.b16 %v640
        %v705 = vunpack.c.h.b16 %v640
        %v706 = vunpack.c.l.b16 %v641
        %v707 = vunpack.c.h.b16 %v641
        %v708 = vunpack.c.l.b16 %v642
        %v709 = vunpack.c.h.b16 %v642
        %v710 = vunpack.c.l.b16 %v643
        %v711 = vunpack.c.h.b16 %v643
        %v712 = vunpack.c.l.b16 %v644
        %v713 = vunpack.c.h.b16 %v644
        %v714 = vunpack.c.l.b16 %v645
        %v715 = vunpack.c.h.b16 %v645
        %v716 = vunpack.c.l.b16 %v646
        %v717 = vunpack.c.h.b16 %v646
        %v718 = vunpack.c.l.b16 %v647
        %v719 = vunpack.c.h.b16 %v647
        %v720 = vunpack.c.l.b16 %v648
        %v721 = vunpack.c.h.b16 %v648
        %v722 = vunpack.c.l.b16 %v649
        %v723 = vunpack.c.h.b16 %v649
        %v724 = vunpack.c.l.b16 %v650
        %v725 = vunpack.c.h.b16 %v650
        %v726 = vunpack.c.l.b16 %v651
        %v727 = vunpack.c.h.b16 %v651
        %v728 = vunpack.c.l.b16 %v652
        %v729 = vunpack.c.h.b16 %v652
        %v730 = vunpack.c.l.b16 %v653
        %v731 = vunpack.c.h.b16 %v653
        %v732 = vunpack.c.l.b16 %v654
        %v733 = vunpack.c.h.b16 %v654
        %v734 = vunpack.c.l.b16 %v655
        %v735 = vunpack.c.h.b16 %v655
        %v736 = vunpack.c.l.b16 %v656
        %v737 = vunpack.c.h.b16 %v656
        %v738 = vunpack.c.l.b16 %v657
        %v739 = vunpack.c.h.b16 %v657
        %v740 = vunpack.c.l.b16 %v658
        %v741 = vunpack.c.h.b16 %v658
        %v742 = vunpack.c.l.b16 %v659
        %v743 = vunpack.c.h.b16 %v659
        %v744 = vunpack.c.l.b16 %v660
        %v745 = vunpack.c.h.b16 %v660
        %v746 = vunpack.c.l.b16 %v661
        %v747 = vunpack.c.h.b16 %v661
        %v748 = vunpack.c.l.b16 %v662
        %v749 = vunpack.c.h.b16 %v662
        %v750 = vunpack.c.l.b16 %v663
        %v751 = vunpack.c.h.b16 %v663
        %v752 = vunpack.c.l.b16 %v664
        %v753 = vunpack.c.h.b16 %v664
        %v754 = vunpack.c.l.b16 %v665
        %v755 = vunpack.c.h.b16 %v665
        %v756 = vunpack.c.l.b16 %v666
        %v757 = vunpack.c.h.b16 %v666
        %v758 = vunpack.c.l.b16 %v667
        %v759 = vunpack.c.h.b16 %v667
        %v760 = vunpack.c.l.b16 %v668
        %v761 = vunpack.c.h.b16 %v668
        %v762 = vunpack.c.l.b16 %v669
        %v763 = vunpack.c.h.b16 %v669
        %v764 = vunpack.c.l.b16 %v670
        %v765 = vunpack.c.h.b16 %v670
        %v766 = vunpack.c.l.b16 %v671
        %v767 = vunpack.c.h.b16 %v671
        %v768 = vpack.c.b16 %v706, %v704
        %v769 = vpack.c.b16 %v707, %v705
        %v770 = vpack.c.b16 %v710, %v708
        %v771 = vpack.c.b16 %v711, %v709
        %v772 = vpack.c.b16 %v714, %v712
        %v773 = vpack.c.b16 %v715, %v713
        %v774 = vpack.c.b16 %v718, %v716
        %v775 = vpack.c.b16 %v719, %v717
        %v776 = vpack.c.b16 %v722, %v720
        %v777 = vpack.c.b16 %v723, %v721
        %v778 = vpack.c.b16 %v726, %v724
        %v779 = vpack.c.b16 %v727, %v725
        %v780 = vpack.c.b16 %v730, %v728
        %v781 = vpack.c.b16 %v731, %v729
        %v782 = vpack.c.b16 %v734, %v732
        %v783 = vpack.c.b16 %v735, %v733
        %v784 = vpack.c.b16 %v738, %v736
        %v785 = vpack.c.b16 %v739, %v737
        %v786 = vpack.c.b16 %v742, %v740
        %v787 = vpack.c.b16 %v743, %v741
        %v788 = vpack.c.b16 %v746, %v744
        %v789 = vpack.c.b16 %v747, %v745
        %v790 = vpack.c.b16 %v750, %v748
        %v791 = vpack.c.b16 %v751, %v749
        %v792 = vpack.c.b16 %v754, %v752
        %v793 = vpack.c.b16 %v755, %v753
        %v794 = vpack.c.b16 %v758, %v756
        %v795 = vpack.c.b16 %v759, %v757
        %v796 = vpack.c.b16 %v762, %v760
        %v797 = vpack.c.b16 %v763, %v761
        %v798 = vpack.c.b16 %v766, %v764
        %v799 = vpack.c.b16 %v767, %v765
        %832 = vmatprep.subr.bf16.mxu0 %v769
        %833 = vmatpush1.bf16.msra.mxu0 %v768
        %834 = vmatprep.subr.bf16.mxu0 %v771
        %835 = vmatpush1.bf16.msra.mxu0 %v770
        %836 = vmatprep.subr.bf16.mxu0 %v773
        %837 = vmatpush1.bf16.msra.mxu0 %v772
        %838 = vmatprep.subr.bf16.mxu0 %v775
        %839 = vmatpush1.bf16.msra.mxu0 %v774
        %840 = vmatprep.subr.bf16.mxu0 %v777
        %841 = vmatpush1.bf16.msra.mxu0 %v776
        %842 = vmatprep.subr.bf16.mxu0 %v779
        %843 = vmatpush1.bf16.msra.mxu0 %v778
        %844 = vmatprep.subr.bf16.mxu0 %v781
        %845 = vmatpush1.bf16.msra.mxu0 %v780
        %846 = vmatprep.subr.bf16.mxu0 %v783
        %847 = vmatpush1.bf16.msra.mxu0 %v782
        %848 = vmatprep.subr.bf16.mxu0 %v785
        %849 = vmatpush1.bf16.msra.mxu0 %v784
        %850 = vmatprep.subr.bf16.mxu0 %v787
        %851 = vmatpush1.bf16.msra.mxu0 %v786
        %852 = vmatprep.subr.bf16.mxu0 %v789
        %853 = vmatpush1.bf16.msra.mxu0 %v788
        %854 = vmatprep.subr.bf16.mxu0 %v791
        %855 = vmatpush1.bf16.msra.mxu0 %v790
        %856 = vmatprep.subr.bf16.mxu0 %v793
        %857 = vmatpush1.bf16.msra.mxu0 %v792
        %858 = vmatprep.subr.bf16.mxu0 %v795
        %859 = vmatpush1.bf16.msra.mxu0 %v794
        %860 = vmatprep.subr.bf16.mxu0 %v797
        %861 = vmatpush1.bf16.msra.mxu0 %v796
        %862 = vmatprep.subr.bf16.mxu0 %v799
        %863 = vmatpush1.bf16.msra.mxu0 %v798
        %864 = vmatprep.mubr.bf16.mxu0 %v637
        %865 = vmatmul.mubr.bf16.gmra.mrb[0].mxu0 %v636
        %v866 = vpop.f32.mrb[0].mxu0
        %v867 = vadd.f32 0.0, %v866
        %v868 = vpop.f32.mrb[0].mxu0
        %v869 = vadd.f32 0.0, %v868
        %v870 = vpop.f32.mrb[0].mxu0
        %v871 = vadd.f32 0.0, %v870
        %v872 = vpop.f32.mrb[0].mxu0
        %v873 = vadd.f32 0.0, %v872
        %874 = vdwg.mxu0
        %v875 = vtanh.pop %v867
        %v876 = vtanh.pop %v869
        %v877 = vtanh.pop %v871
        %v878 = vtanh.pop %v873
        %v880 = vlaneseq
        %v881 = vshrl.u32 %v880, 7
        %v882 = vsub.s32 0, %v881
        %v883 = vrot.slane %v639, %v882
        %v884 = vlaneseq
        %v885 = vshrl.u32 %v884, 7
        %v886 = vsub.s32 1, %v885
        %v887 = vrot.slane %v639, %v886
        %v890 = vmul.f32 %v875, %v883
        %v891 = vmul.f32 %v876, %v887
        %v892 = vmul.f32 %v877, %v883
        %v893 = vmul.f32 %v878, %v887
        %894 = vadd.xlane.f32.xlu0 %v890
        %v895 = vpop.xlane.xlu0 %894
        %896 = vadd.xlane.f32.xlu0 %v892
        %v897 = vpop.xlane.xlu0 %896
        %898 = vadd.xlane.f32.xlu0 %v891
        %v899 = vpop.xlane.xlu0 %898
        %900 = vadd.xlane.f32.xlu0 %v893
        %v901 = vpop.xlane.xlu0 %900
        %v902 = vsub.f32 %v895, %v899
        %v903 = vsub.f32 %v897, %v901
        %v904 = vxor.u32 %v902, 2147483648
        %v905 = vxor.u32 %v903, 2147483648
        %v906 = vmul.f32 %v904, 1.442695
        %v907 = vpow.pop %v906
        %v908 = vmul.f32 %v905, 1.442695
        %v909 = vpow.pop %v908
        %v910 = vadd.f32 %v907, 1.0
        %v911 = vadd.f32 %v909, 1.0
        %v912 = vrcp.pop %v910
        %v913 = vmul.f32 1.0, %v912
        %v914 = vrcp.pop %v911
        %v915 = vmul.f32 1.0, %v914
        %v916 = vmul.f32 %v632, %v913
        %v917 = vmul.f32 %v634, %v915
        %v918 = vsub.f32 1.0, %v913
        %v919 = vsub.f32 1.0, %v915
        %v920 = vmul.f32 %v633, %v918
        %v921 = vmul.f32 %v635, %v919
        %v922 = vadd.f32 %v916, %v920
        %v923 = vadd.f32 %v917, %v921
        %v924 = vpack.c.bf16 %v923, %v922
        %v925 = vld [vmem:[%s5] sm:$0xf]
        %v926 = vld [vmem:[%s5 + $0x4] sm:$0xf]
        %v927 = vld [vmem:[%s5 + $0x8] sm:$0xf]
        %v928 = vld [vmem:[%s5 + $0xc] sm:$0xf]
        %v929 = vld [vmem:[%s5 + $0x10] sm:$0xf]
        %v930 = vld [vmem:[%s5 + $0x14] sm:$0xf]
        %v931 = vld [vmem:[%s5 + $0x18] sm:$0xf]
        %v932 = vld [vmem:[%s5 + $0x1c] sm:$0xf]
        %v933 = vld [vmem:[%s5 + $0x20] sm:$0xf]
        %v934 = vld [vmem:[%s5 + $0x24] sm:$0xf]
        %v935 = vld [vmem:[%s5 + $0x28] sm:$0xf]
        %v936 = vld [vmem:[%s5 + $0x2c] sm:$0xf]
        %v937 = vld [vmem:[%s5 + $0x30] sm:$0xf]
        %v938 = vld [vmem:[%s5 + $0x34] sm:$0xf]
        %v939 = vld [vmem:[%s5 + $0x38] sm:$0xf]
        %v940 = vld [vmem:[%s5 + $0x3c] sm:$0xf]
        %v941 = vld [vmem:[%s6 + $0x2] ss:$0 sm:$0xff]
        %v958 = vunpack.c.l.b16 %v925
        %v959 = vunpack.c.l.b16 %v926
        %v960 = vunpack.c.l.b16 %v927
        %v961 = vunpack.c.l.b16 %v928
        %v962 = vunpack.c.l.b16 %v929
        %v963 = vunpack.c.l.b16 %v930
        %v964 = vunpack.c.l.b16 %v931
        %v965 = vunpack.c.l.b16 %v932
        %v966 = vunpack.c.l.b16 %v933
        %v967 = vunpack.c.l.b16 %v934
        %v968 = vunpack.c.l.b16 %v935
        %v969 = vunpack.c.l.b16 %v936
        %v970 = vunpack.c.l.b16 %v937
        %v971 = vunpack.c.l.b16 %v938
        %v972 = vunpack.c.l.b16 %v939
        %v973 = vunpack.c.l.b16 %v940
        %v974 = vpack.c.b16 %v959, %v958
        %v975 = vpack.c.b16 %v961, %v960
        %v976 = vpack.c.b16 %v963, %v962
        %v977 = vpack.c.b16 %v965, %v964
        %v978 = vpack.c.b16 %v967, %v966
        %v979 = vpack.c.b16 %v969, %v968
        %v980 = vpack.c.b16 %v971, %v970
        %v981 = vpack.c.b16 %v973, %v972
        %990 = vmatprep.subr.bf16.mxu0 0
        %991 = vmatpush1.bf16.msra.mxu0 %v974
        %992 = vmatprep.subr.bf16.mxu0 0
        %993 = vmatpush1.bf16.msra.mxu0 %v975
        %994 = vmatprep.subr.bf16.mxu0 0
        %995 = vmatpush1.bf16.msra.mxu0 %v976
        %996 = vmatprep.subr.bf16.mxu0 0
        %997 = vmatpush1.bf16.msra.mxu0 %v977
        %998 = vmatprep.subr.bf16.mxu0 0
        %999 = vmatpush1.bf16.msra.mxu0 %v978
        %1000 = vmatprep.subr.bf16.mxu0 0
        %1001 = vmatpush1.bf16.msra.mxu0 %v979
        %1002 = vmatprep.subr.bf16.mxu0 0
        %1003 = vmatpush1.bf16.msra.mxu0 %v980
        %1004 = vmatprep.subr.bf16.mxu0 0
        %1005 = vmatpush1.bf16.msra.mxu0 %v981
        %1006 = vmatprep.subr.bf16.mxu0 0
        %1007 = vmatpush1.bf16.msra.mxu0 0
        %1008 = vmatprep.subr.bf16.mxu0 0
        %1009 = vmatpush1.bf16.msra.mxu0 0
        %1010 = vmatprep.subr.bf16.mxu0 0
        %1011 = vmatpush1.bf16.msra.mxu0 0
        %1012 = vmatprep.subr.bf16.mxu0 0
        %1013 = vmatpush1.bf16.msra.mxu0 0
        %1014 = vmatprep.subr.bf16.mxu0 0
        %1015 = vmatpush1.bf16.msra.mxu0 0
        %1016 = vmatprep.subr.bf16.mxu0 0
        %1017 = vmatpush1.bf16.msra.mxu0 0
        %1018 = vmatprep.subr.bf16.mxu0 0
        %1019 = vmatpush1.bf16.msra.mxu0 0
        %1020 = vmatprep.subr.bf16.mxu0 0
        %1021 = vmatpush1.bf16.msra.mxu0 0
        %1022 = vmatprep.mubr.bf16.mxu0 0
        %1023 = vmatmul.mubr.bf16.gmra.mrb[0].mxu0 %v924
        %v1024 = vpop.f32.mrb[0].mxu0
        %v1025 = vadd.f32 %v941, %v1024
        %v1026 = vpop.f32.mrb[0].mxu0
        %v1027 = vpop.f32.mrb[0].mxu0
        %v1028 = vadd.f32 %v941, %v1027
        %v1029 = vpop.f32.mrb[0].mxu0
        %1030 = vdwg.mxu0
        %1031 = vst.msk [vmem:[%s310] sm:$0xff] %vm321, %v1025
        %1032 = vst.msk [vmem:[%s310 + $0x8] sm:$0xff] %vm321, %v1028
        %s1033 = smul.u32 2, %s20
        %p1034 = scmp.lt.s32.totalorder %s1033, 3
        %s1035 = scalar_select %p1034, %s1033, 3
        %s1036 = smul.addr %s1035, 8
        %s1037 = scalar_lea.vmem %s7, %s1036
        // Predicated region
        $region57: #{tpu_custom_call.1} parent=47 // pred_check
          %p1038 = pneg %p190
        $region58: #{tpu_custom_call.1} parent=47 // pred_check_branch
          %1040 = sbr.rel (%p1038) target = $region60
        $region59: #{tpu_custom_call.1} parent=47 // pred_region
          %s1041 = smul.u32 2, %s20
        $region60: #{tpu_custom_call.1} parent=47 // pred_fallthru
          _
      $region48: #{tpu_custom_call.1} parent=5 // pred_fallthru
        _
      %p1042 = scmp.le.s32.totalorder 2, %s15
      // Predicated region
      $region61: #{tpu_custom_call.1} parent=5 // pred_check
        %p1043 = pneg %p1042
      $region62: #{tpu_custom_call.1} parent=5 // pred_check_branch
        %1045 = sbr.rel (%p1043) target = $region64
      $region63: #{tpu_custom_call.1} parent=5 // pred_region
        %s1046 = ssub.s32 %s15, 2
        // Predicated region
        $region65: #{tpu_custom_call.1} parent=63 // pred_check
          %p1047 = pneg %p196
        $region66: #{tpu_custom_call.1} parent=63 // pred_check_branch
          %1049 = sbr.rel (%p1047) target = $region68
        $region67: #{tpu_custom_call.1} parent=63 // pred_region
          %s1050 = smul.u32 2, %s21
          %p1051 = scmp.lt.s32.totalorder %s1050, 3
          %s1052 = scalar_select %p1051, %s1050, 3
          %s1053 = smul.addr %s1052, 8
          %s1054 = scalar_lea.vmem %s7, %s1053
        $region68: #{tpu_custom_call.1} parent=63 // pred_fallthru
          _
      $region64: #{tpu_custom_call.1} parent=5 // pred_fallthru
        _
    $region6: #{tpu_custom_call.1} parent=1 // loop_footer
      %s19 = sadd.s32 1, %s15
    $region7: #{tpu_custom_call.1} parent=1 // loop_footer_branch
      %14 = sbr.rel target = $region3
    $region8: #{tpu_custom_call.1} parent=1 // loop_exit
      _
    %1055 = vsyncpa [#allocation3], 1
    %s1056 = scalar_lea.sflag [#allocation3], 1
    %1057 = vsyncpa %s1056, 1
    %1058 = vsyncpa [#allocation5], 1

</llo_original>
